<compile_context>
chip_gen: v6e
topology: v6e:2x2x1
jax: 0.10.0
libtpu: 0.0.40
codegen_flags: <defaults>
</compile_context>

<pallas_src>
import functools

import jax
import jax.numpy as jnp
from jax.experimental import pallas as pl
from jax.experimental.pallas import tpu as pltpu

SELU_ALPHA = 1.6732632423543772
SELU_SCALE = 1.0507009873554805

LANE = 128             # hidden dim (50) padded to this
DEFAULT_TILE_B = 2048  # rows of x / out streamed per grid step


def _round_up(n, m):
    return ((n + m - 1) // m) * m


def _pad2d(a, rows, cols):
    return jnp.pad(a, ((0, rows - a.shape[0]), (0, cols - a.shape[1])))


def _elementwise_dtype():
    """bf16 VPU/EUP exists on v6e and later; keep f32 elementwise on v5e/v5p/v4."""
    try:
        kind = jax.devices()[0].device_kind.lower()
    except Exception:
        return jnp.float32
    if any(tag in kind for tag in ("v6", "v7", "7x", "v8")):
        return jnp.bfloat16
    return jnp.float32


def _selu(x):
    # Branch-free, exp argument clamped: scale*(max(x,0) + alpha*(exp(min(x,0))-1)).
    return SELU_SCALE * (jnp.maximum(x, 0) +
                         SELU_ALPHA * (jnp.exp(jnp.minimum(x, 0)) - 1))


def net_regression_kernel(x_ref, w1_ref, b1_ref, w2_ref, b2_ref, w3_ref, b3_ref,
                          o_ref, *, act_dtype):
    # In-kernel f32 -> bf16 cast (avoids a separate XLA pass over x in HBM).
    x = x_ref[...].astype(w1_ref.dtype)

    # first: Linear(input_size, size) + SELU   (bf16 MXU, f32 accumulate)
    h = jnp.dot(x, w1_ref[...], preferred_element_type=jnp.float32)
    h = _selu(h.astype(act_dtype) + b1_ref[...])

    # fc: Linear(size, size) + SELU
    h = jnp.dot(h.astype(w2_ref.dtype), w2_ref[...],
                preferred_element_type=jnp.float32)
    h = _selu(h.astype(act_dtype) + b2_ref[...])

    # last: Linear(size, num_classes) + Sigmoid.
    # w3/b3 arrive pre-halved, so sigmoid(t) = 0.5*tanh(t/2) + 0.5 = 0.5*tanh(z)+0.5
    # -> a single EUP op per element instead of exp + reciprocal.
    z = jnp.dot(h.astype(w3_ref.dtype), w3_ref[...],
                preferred_element_type=jnp.float32)
    z = z.astype(act_dtype) + b3_ref[...]
    o_ref[...] = (0.5 * jnp.tanh(z) + 0.5).astype(o_ref.dtype)


@functools.partial(jax.jit, static_argnames=("tile_b",))
def net_regression_forward(x, params, *, tile_b=DEFAULT_TILE_B):
    w1, b1, w2, b2, w3, b3 = params
    batch, input_size = x.shape
    size = w1.shape[1]
    num_classes = w3.shape[1]

    act_dtype = _elementwise_dtype()
    h_pad = _round_up(size, LANE)  # 50 -> 128

    bf = jnp.bfloat16
    # Zero lane-padding of the hidden dim only; padded units get bias 0 ->
    # SELU(0)=0 and zero outgoing weights -> no effect on the real outputs.
    w1p = _pad2d(w1, input_size, h_pad).astype(bf)
    w2p = _pad2d(w2, h_pad, h_pad).astype(bf)
    # Pre-halve the last layer so the kernel can use the tanh-form sigmoid.
    w3p = _pad2d(0.5 * w3, h_pad, num_classes).astype(bf)
    b1p = _pad2d(b1.reshape(1, -1), 1, h_pad).astype(act_dtype)
    b2p = _pad2d(b2.reshape(1, -1), 1, h_pad).astype(act_dtype)
    b3p = (0.5 * b3).reshape(1, -1).astype(act_dtype)

    # Batch tiling: x/out streamed, weights resident.  For batch > 8 force a
    # multiple-of-8 tile that yields >= 2 grid steps (megacore split on v7x).
    if batch <= 8:
        tb = batch                                  # single block == full array dim
    else:
        half = _round_up(pl.cdiv(batch, 2), 8)
        tb = max(8, (min(tile_b, half) // 8) * 8)
    grid = (pl.cdiv(batch, tb),)                    # ragged edge block is masked

    kernel = functools.partial(net_regression_kernel, act_dtype=act_dtype)

    def resident(shape):
        return pl.BlockSpec(shape, lambda i: (0, 0))

    out = pl.pallas_call(
        kernel,
        out_shape=jax.ShapeDtypeStruct((batch, num_classes), jnp.float32),
        grid=grid,
        in_specs=[
            pl.BlockSpec((tb, input_size), lambda i: (i, 0)),   # streamed x tile
            resident(w1p.shape), resident(b1p.shape),
            resident(w2p.shape), resident(b2p.shape),
            resident(w3p.shape), resident(b3p.shape),
        ],
        out_specs=pl.BlockSpec((tb, num_classes), lambda i: (i, 0)),  # exact width
        compiler_params=pltpu.CompilerParams(
            dimension_semantics=("parallel",),                  # megacore on v7x
        ),
    )(x, w1p, b1p, w2p, b2p, w3p, b3p)

    return out


def init_params(key, input_size, num_classes, size=50):
    """Deterministic synthetic init (PyTorch-Linear-style uniform bounds)."""
    ks = jax.random.split(key, 6)

    def linear(kw, kb, fan_in, fan_out):
        bound = 1.0 / jnp.sqrt(fan_in)
        w = jax.random.uniform(kw, (fan_in, fan_out), jnp.float32, -bound, bound)
        b = jax.random.uniform(kb, (fan_out,), jnp.float32, -bound, bound)
        return w, b

    w1, b1 = linear(ks[0], ks[1], input_size, size)
    w2, b2 = linear(ks[2], ks[3], size, size)
    w3, b3 = linear(ks[4], ks[5], size, num_classes)
    return (w1, b1, w2, b2, w3, b3)


def reference_forward_mixed(x, params, act_dtype):
    """Pure-JAX reference mirroring the kernel's bf16-matmul / act_dtype mix."""
    w1, b1, w2, b2, w3, b3 = params
    bf = jnp.bfloat16

    def lin(h, w, b):
        y = jnp.dot(h.astype(bf), w.astype(bf), preferred_element_type=jnp.float32)
        return y.astype(act_dtype) + b.astype(act_dtype)

    h = jax.nn.selu(lin(x, w1, b1))
    h = jax.nn.selu(lin(h, w2, b2))
    return jax.nn.sigmoid(lin(h, w3, b3).astype(jnp.float32))


def reference_forward_f32(x, params):
    """Pure-f32 reference of the original PyTorch module."""
    w1, b1, w2, b2, w3, b3 = params
    h = jax.nn.selu(x @ w1 + b1)
    h = jax.nn.selu(h @ w2 + b2)
    return jax.nn.sigmoid(h @ w3 + b3)


if __name__ == "__main__":
    key = jax.random.PRNGKey(0)
    k_x1, k_x2, k_p = jax.random.split(key, 3)

    input_size, num_classes, size = 32, 4, 50
    params = init_params(k_p, input_size, num_classes, size=size)
    act_dtype = _elementwise_dtype()

    # Case 1: tiny batch (single block, block shape == full array dims).
    x_small = jax.random.normal(k_x1, (8, input_size), jnp.float32)
    out_small = jax.block_until_ready(net_regression_forward(x_small, params))
    assert out_small.shape == (8, num_classes)
    assert jnp.allclose(out_small, reference_forward_mixed(x_small, params, act_dtype),
                        atol=2e-2, rtol=2e-2)
    assert jnp.allclose(out_small, reference_forward_f32(x_small, params),
                        atol=5e-2, rtol=5e-2)

    # Case 2: batch > 8, not a tile multiple (grid of 2, ragged masked edge block).
    x_big = jax.random.normal(k_x2, (1000, input_size), jnp.float32)
    out_big = jax.block_until_ready(net_regression_forward(x_big, params))
    assert out_big.shape == (1000, num_classes)
    assert jnp.allclose(out_big, reference_forward_mixed(x_big, params, act_dtype),
                        atol=2e-2, rtol=2e-2)
    assert jnp.allclose(out_big, reference_forward_f32(x_big, params),
                        atol=5e-2, rtol=5e-2)

    print("KERNEL_OK")
</pallas_src>

<mosaic_0001>
module attributes {stable_mosaic.version = 11 : i64} {
  func.func @net_regression_kernel(%arg0: i32, %arg1: memref<8x32xf32, #tpu.memory_space<vmem>>, %arg2: memref<32x128xbf16, #tpu.memory_space<vmem>>, %arg3: memref<1x128xf32, #tpu.memory_space<vmem>>, %arg4: memref<128x128xbf16, #tpu.memory_space<vmem>>, %arg5: memref<1x128xf32, #tpu.memory_space<vmem>>, %arg6: memref<128x4xbf16, #tpu.memory_space<vmem>>, %arg7: memref<1x4xf32, #tpu.memory_space<vmem>>, %arg8: memref<8x4xf32, #tpu.memory_space<vmem>>) attributes {dimension_semantics = [#tpu.dimension_semantics<parallel>], iteration_bounds = array<i64: 1>, scalar_prefetch = 0 : i64, scratch_operands = 0 : i64, tpu.core_type = #tpu.core_type<tc>, window_params = [{transform_indices = @transform_0, window_bounds = array<i64: 8, 32>}, {pipeline_mode = #tpu.pipeline_mode<synchronous>, transform_indices = @transform_1, window_bounds = array<i64: 32, 128>}, {pipeline_mode = #tpu.pipeline_mode<synchronous>, transform_indices = @transform_2, window_bounds = array<i64: 1, 128>}, {pipeline_mode = #tpu.pipeline_mode<synchronous>, transform_indices = @transform_3, window_bounds = array<i64: 128, 128>}, {pipeline_mode = #tpu.pipeline_mode<synchronous>, transform_indices = @transform_4, window_bounds = array<i64: 1, 128>}, {pipeline_mode = #tpu.pipeline_mode<synchronous>, transform_indices = @transform_5, window_bounds = array<i64: 128, 4>}, {pipeline_mode = #tpu.pipeline_mode<synchronous>, transform_indices = @transform_6, window_bounds = array<i64: 1, 4>}, {transform_indices = @transform_7, window_bounds = array<i64: 8, 4>}]} {
    %c0 = arith.constant 0 : index
    %c0_0 = arith.constant 0 : index
    %0 = vector.load %arg1[%c0, %c0_0] : memref<8x32xf32, #tpu.memory_space<vmem>>, vector<8x32xf32>
    %1 = arith.truncf %0 : vector<8x32xf32> to vector<8x32xbf16>
    %c0_1 = arith.constant 0 : index
    %c0_2 = arith.constant 0 : index
    %2 = vector.load %arg2[%c0_1, %c0_2] : memref<32x128xbf16, #tpu.memory_space<vmem>>, vector<32x128xbf16>
    %cst = arith.constant dense<0.000000e+00> : vector<8x128xf32>
    %3 = tpu.matmul %1, %2, %cst {dimension_numbers = #tpu.dot_dimension_numbers<[1], [0], [0], [1], [0, 0, 1, 1], [], []>} : vector<8x32xbf16>, vector<32x128xbf16>, vector<8x128xf32> -> vector<8x128xf32>
    %c0_3 = arith.constant 0 : index
    %c0_4 = arith.constant 0 : index
    %4 = vector.load %arg3[%c0_3, %c0_4] : memref<1x128xf32, #tpu.memory_space<vmem>>, vector<1x128xf32>
    %5 = vector.broadcast %4 : vector<1x128xf32> to vector<8x128xf32>
    %6 = arith.addf %3, %5 : vector<8x128xf32>
    %cst_5 = arith.constant 0.000000e+00 : f32
    %7 = vector.broadcast %cst_5 : f32 to vector<8x128xf32>
    %8 = arith.maximumf %6, %7 : vector<8x128xf32>
    %cst_6 = arith.constant 0.000000e+00 : f32
    %9 = vector.broadcast %cst_6 : f32 to vector<8x128xf32>
    %10 = arith.minimumf %6, %9 : vector<8x128xf32>
    %11 = math.exp %10 : vector<8x128xf32>
    %cst_7 = arith.constant 1.000000e+00 : f32
    %12 = vector.broadcast %cst_7 : f32 to vector<8x128xf32>
    %13 = arith.subf %11, %12 : vector<8x128xf32>
    %cst_8 = arith.constant 1.67326319 : f32
    %14 = vector.broadcast %cst_8 : f32 to vector<8x128xf32>
    %15 = arith.mulf %14, %13 : vector<8x128xf32>
    %16 = arith.addf %8, %15 : vector<8x128xf32>
    %cst_9 = arith.constant 1.05070102 : f32
    %17 = vector.broadcast %cst_9 : f32 to vector<8x128xf32>
    %18 = arith.mulf %17, %16 : vector<8x128xf32>
    %19 = arith.truncf %18 : vector<8x128xf32> to vector<8x128xbf16>
    %c0_10 = arith.constant 0 : index
    %c0_11 = arith.constant 0 : index
    %20 = vector.load %arg4[%c0_10, %c0_11] : memref<128x128xbf16, #tpu.memory_space<vmem>>, vector<128x128xbf16>
    %cst_12 = arith.constant dense<0.000000e+00> : vector<8x128xf32>
    %21 = tpu.matmul %19, %20, %cst_12 {dimension_numbers = #tpu.dot_dimension_numbers<[1], [0], [0], [1], [0, 0, 1, 1], [], []>} : vector<8x128xbf16>, vector<128x128xbf16>, vector<8x128xf32> -> vector<8x128xf32>
    %c0_13 = arith.constant 0 : index
    %c0_14 = arith.constant 0 : index
    %22 = vector.load %arg5[%c0_13, %c0_14] : memref<1x128xf32, #tpu.memory_space<vmem>>, vector<1x128xf32>
    %23 = vector.broadcast %22 : vector<1x128xf32> to vector<8x128xf32>
    %24 = arith.addf %21, %23 : vector<8x128xf32>
    %cst_15 = arith.constant 0.000000e+00 : f32
    %25 = vector.broadcast %cst_15 : f32 to vector<8x128xf32>
    %26 = arith.maximumf %24, %25 : vector<8x128xf32>
    %cst_16 = arith.constant 0.000000e+00 : f32
    %27 = vector.broadcast %cst_16 : f32 to vector<8x128xf32>
    %28 = arith.minimumf %24, %27 : vector<8x128xf32>
    %29 = math.exp %28 : vector<8x128xf32>
    %cst_17 = arith.constant 1.000000e+00 : f32
    %30 = vector.broadcast %cst_17 : f32 to vector<8x128xf32>
    %31 = arith.subf %29, %30 : vector<8x128xf32>
    %cst_18 = arith.constant 1.67326319 : f32
    %32 = vector.broadcast %cst_18 : f32 to vector<8x128xf32>
    %33 = arith.mulf %32, %31 : vector<8x128xf32>
    %34 = arith.addf %26, %33 : vector<8x128xf32>
    %cst_19 = arith.constant 1.05070102 : f32
    %35 = vector.broadcast %cst_19 : f32 to vector<8x128xf32>
    %36 = arith.mulf %35, %34 : vector<8x128xf32>
    %37 = arith.truncf %36 : vector<8x128xf32> to vector<8x128xbf16>
    %c0_20 = arith.constant 0 : index
    %c0_21 = arith.constant 0 : index
    %38 = vector.load %arg6[%c0_20, %c0_21] : memref<128x4xbf16, #tpu.memory_space<vmem>>, vector<128x4xbf16>
    %cst_22 = arith.constant dense<0.000000e+00> : vector<8x4xf32>
    %39 = tpu.matmul %37, %38, %cst_22 {dimension_numbers = #tpu.dot_dimension_numbers<[1], [0], [0], [1], [0, 0, 1, 1], [], []>} : vector<8x128xbf16>, vector<128x4xbf16>, vector<8x4xf32> -> vector<8x4xf32>
    %c0_23 = arith.constant 0 : index
    %c0_24 = arith.constant 0 : index
    %40 = vector.load %arg7[%c0_23, %c0_24] : memref<1x4xf32, #tpu.memory_space<vmem>>, vector<1x4xf32>
    %41 = vector.broadcast %40 : vector<1x4xf32> to vector<8x4xf32>
    %42 = arith.addf %39, %41 : vector<8x4xf32>
    %43 = math.tanh %42 : vector<8x4xf32>
    %cst_25 = arith.constant 5.000000e-01 : f32
    %44 = vector.broadcast %cst_25 : f32 to vector<8x4xf32>
    %45 = arith.mulf %44, %43 : vector<8x4xf32>
    %cst_26 = arith.constant 5.000000e-01 : f32
    %46 = vector.broadcast %cst_26 : f32 to vector<8x4xf32>
    %47 = arith.addf %45, %46 : vector<8x4xf32>
    %c0_27 = arith.constant 0 : index
    %c0_28 = arith.constant 0 : index
    %48 = vector.load %arg8[%c0_27, %c0_28] : memref<8x4xf32, #tpu.memory_space<vmem>>, vector<8x4xf32>
    tpu.vector_store %arg8[%c0_27, %c0_28], %47 {strides = array<i32>} : memref<8x4xf32, #tpu.memory_space<vmem>>, vector<8x4xf32>,
    return
  }
  func.func @transform_0(%arg0: i32) -> (i32, i32) {
    %c0_i32 = arith.constant 0 : i32
    %c0_i32_0 = arith.constant 0 : i32
    return %arg0, %c0_i32 : i32, i32
  }
  func.func @transform_1(%arg0: i32) -> (i32, i32) {
    %c0_i32 = arith.constant 0 : i32
    %c0_i32_0 = arith.constant 0 : i32
    %c0_i32_1 = arith.constant 0 : i32
    return %c0_i32, %c0_i32_0 : i32, i32
  }
  func.func @transform_2(%arg0: i32) -> (i32, i32) {
    %c0_i32 = arith.constant 0 : i32
    %c0_i32_0 = arith.constant 0 : i32
    %c0_i32_1 = arith.constant 0 : i32
    return %c0_i32, %c0_i32_0 : i32, i32
  }
  func.func @transform_3(%arg0: i32) -> (i32, i32) {
    %c0_i32 = arith.constant 0 : i32
    %c0_i32_0 = arith.constant 0 : i32
    %c0_i32_1 = arith.constant 0 : i32
    return %c0_i32, %c0_i32_0 : i32, i32
  }
  func.func @transform_4(%arg0: i32) -> (i32, i32) {
    %c0_i32 = arith.constant 0 : i32
    %c0_i32_0 = arith.constant 0 : i32
    %c0_i32_1 = arith.constant 0 : i32
    return %c0_i32, %c0_i32_0 : i32, i32
  }
  func.func @transform_5(%arg0: i32) -> (i32, i32) {
    %c0_i32 = arith.constant 0 : i32
    %c0_i32_0 = arith.constant 0 : i32
    %c0_i32_1 = arith.constant 0 : i32
    return %c0_i32, %c0_i32_0 : i32, i32
  }
  func.func @transform_6(%arg0: i32) -> (i32, i32) {
    %c0_i32 = arith.constant 0 : i32
    %c0_i32_0 = arith.constant 0 : i32
    %c0_i32_1 = arith.constant 0 : i32
    return %c0_i32, %c0_i32_0 : i32, i32
  }
  func.func @transform_7(%arg0: i32) -> (i32, i32) {
    %c0_i32 = arith.constant 0 : i32
    %c0_i32_0 = arith.constant 0 : i32
    return %arg0, %c0_i32 : i32, i32
  }
}

</mosaic_0001>

<llo_original>
// kernel: net_regression_forward.1
$region0: #{net_regression_forward.1}
  #allocation0 [shape = 'u32[]', space=smem, size = 0x4, offset = 0x4, fixed_abs, tag = 'smem constant byte address 0x4 - core index']
  #allocation1 [shape = 'u32[144,128]{1,0:T(1,128)}', space=vmem, size = 0x12000, scoped, tag = 'internal scratch']
  %s0 = inlined_call_operand.vmem [shape: f32[8,32], index: 0, kind: input, shape index: {}]
  %s1 = inlined_call_operand.vmem [shape: bf16[32,128], index: 1, kind: input, shape index: {}]
  %s2 = inlined_call_operand.vmem [shape: f32[1,128], index: 2, kind: input, shape index: {}]
  %s3 = inlined_call_operand.vmem [shape: bf16[128,128], index: 3, kind: input, shape index: {}]
  %s4 = inlined_call_operand.vmem [shape: f32[1,128], index: 4, kind: input, shape index: {}]
  %s5 = inlined_call_operand.vmem [shape: bf16[128,4], index: 5, kind: input, shape index: {}]
  %s6 = inlined_call_operand.vmem [shape: f32[1,4], index: 6, kind: input, shape index: {}]
  %s7 = inlined_call_operand.vmem [shape: f32[8,4], index: 7, kind: output, shape index: {}]
  %s8 = sld [smem:[#allocation0]]
  $region38: #{net_regression_forward.1} parent=0
    _
  %s10 = ssub.s32 1, %s8
  %s11 = scalar_select 0, %s10, %s8
  // Predicated region
  $region2: #{net_regression_forward.1} parent=0 // pred_check
    _
  $region3: #{net_regression_forward.1} parent=0 // pred_check_branch
    %13 = sbr.rel (0) target = $region5
  $region4: #{net_regression_forward.1} parent=0 // pred_region
    _
  $region5: #{net_regression_forward.1} parent=0 // pred_fallthru
    _
  // Predicated region
  $region6: #{net_regression_forward.1} parent=0 // pred_check
    _
  $region7: #{net_regression_forward.1} parent=0 // pred_check_branch
    %15 = sbr.rel (0) target = $region9
  $region8: #{net_regression_forward.1} parent=0 // pred_region
    _
  $region9: #{net_regression_forward.1} parent=0 // pred_fallthru
    _
  // Predicated region
  $region10: #{net_regression_forward.1} parent=0 // pred_check
    _
  $region11: #{net_regression_forward.1} parent=0 // pred_check_branch
    %17 = sbr.rel (0) target = $region13
  $region12: #{net_regression_forward.1} parent=0 // pred_region
    _
  $region13: #{net_regression_forward.1} parent=0 // pred_fallthru
    _
  // Predicated region
  $region14: #{net_regression_forward.1} parent=0 // pred_check
    _
  $region15: #{net_regression_forward.1} parent=0 // pred_check_branch
    %19 = sbr.rel (0) target = $region17
  $region16: #{net_regression_forward.1} parent=0 // pred_region
    _
  $region17: #{net_regression_forward.1} parent=0 // pred_fallthru
    _
  // Predicated region
  $region18: #{net_regression_forward.1} parent=0 // pred_check
    _
  $region19: #{net_regression_forward.1} parent=0 // pred_check_branch
    %21 = sbr.rel (0) target = $region21
  $region20: #{net_regression_forward.1} parent=0 // pred_region
    _
  $region21: #{net_regression_forward.1} parent=0 // pred_fallthru
    _
  // Predicated region
  $region22: #{net_regression_forward.1} parent=0 // pred_check
    _
  $region23: #{net_regression_forward.1} parent=0 // pred_check_branch
    %23 = sbr.rel (0) target = $region25
  $region24: #{net_regression_forward.1} parent=0 // pred_region
    _
  $region25: #{net_regression_forward.1} parent=0 // pred_fallthru
    _
  // Predicated region
  $region26: #{net_regression_forward.1} parent=0 // pred_check
    _
  $region27: #{net_regression_forward.1} parent=0 // pred_check_branch
    %25 = sbr.rel (0) target = $region29
  $region28: #{net_regression_forward.1} parent=0 // pred_region
    _
  $region29: #{net_regression_forward.1} parent=0 // pred_fallthru
    _
  %v27 = vld [vmem:[%s0] sm:$0xff]
  %v28 = vpack.c.bf16 %v27, %v27
  %v29 = vld [vmem:[%s1] sm:$0xf]
  %v30 = vld [vmem:[%s1 + $0x4] sm:$0xf]
  %v31 = vld [vmem:[%s1 + $0x8] sm:$0xf]
  %v32 = vld [vmem:[%s1 + $0xc] sm:$0xf]
  %v33 = vld [vmem:[%s2] sm:$0x1]
  %v35 = vlaneseq
  %v36 = vshrl.u32 %v35, 7
  %v37 = vsub.s32 0, %v36
  %v38 = vrot.slane %v33, %v37
  %v44 = vunpack.c.l.b16 %v29
  %v45 = vunpack.c.l.b16 %v30
  %v46 = vunpack.c.l.b16 %v31
  %v47 = vunpack.c.l.b16 %v32
  %v48 = vpack.c.b16 %v45, %v44
  %v49 = vpack.c.b16 %v47, %v46
  %vm52 = vcmask 261120
  %v54 = vsel %vm52, %v28, 0
  %56 = vmatprep.subr.bf16.mxu0 0
  %57 = vmatpush1.bf16.msra.mxu0 0
  %58 = vmatprep.subr.bf16.mxu0 0
  %59 = vmatpush1.bf16.msra.mxu0 0
  %60 = vmatprep.subr.bf16.mxu0 0
  %61 = vmatpush1.bf16.msra.mxu0 0
  %62 = vmatprep.subr.bf16.mxu0 0
  %63 = vmatpush1.bf16.msra.mxu0 0
  %64 = vmatprep.subr.bf16.mxu0 0
  %65 = vmatpush1.bf16.msra.mxu0 0
  %66 = vmatprep.subr.bf16.mxu0 0
  %67 = vmatpush1.bf16.msra.mxu0 0
  %68 = vmatprep.subr.bf16.mxu0 0
  %69 = vmatpush1.bf16.msra.mxu0 %v49
  %70 = vmatprep.subr.bf16.mxu0 0
  %71 = vmatpush1.bf16.msra.mxu0 %v48
  %72 = vmatprep.subr.bf16.mxu0 0
  %73 = vmatpush2.bf16.msra.mxu0 0
  %74 = vmatprep.subr.bf16.mxu0 0
  %75 = vmatpush2.bf16.msra.mxu0 0
  %76 = vmatprep.subr.bf16.mxu0 0
  %77 = vmatpush2.bf16.msra.mxu0 0
  %78 = vmatprep.subr.bf16.mxu0 0
  %79 = vmatpush2.bf16.msra.mxu0 0
  %80 = vmatprep.subr.bf16.mxu0 0
  %81 = vmatpush2.bf16.msra.mxu0 0
  %82 = vmatprep.subr.bf16.mxu0 0
  %83 = vmatpush2.bf16.msra.mxu0 0
  %84 = vmatprep.subr.bf16.mxu0 0
  %85 = vmatpush2.bf16.msra.mxu0 0
  %86 = vmatprep.subr.bf16.mxu0 0
  %87 = vmatpush2.bf16.msra.mxu0 0
  %88 = vmatprep.mubr.bf16.mxu0 0
  %89 = vmatmul.mubr.bf16.gmra.mxu0 %v54
  %v90 = vpop.f32.mrf.mxu0
  %v91 = vadd.f32 %v38, %v90
  %v92 = vpop.f32.mrf.mxu0
  %v93 = vpop.f32.mrf.mxu0
  %v94 = vpop.f32.mrf.mxu0
  %95 = vdwg.mxu0
  %v96 = vmax.f32 %v91, 0.0
  %v97 = vmin.f32 %v91, 0.0
  %v98 = vmul.f32 %v97, 1.442695
  %v99 = vpow.pop %v98
  %v100 = vsub.f32 %v99, 1.0
  %v101 = vmul.f32 %v100, 1.6732632
  %v102 = vadd.f32 %v96, %v101
  %v103 = vmul.f32 %v102, 1.050701
  %v104 = vpack.c.bf16 %v103, %v103
  %v105 = vld [vmem:[%s3] sm:$0xf]
  %v106 = vld [vmem:[%s3 + $0x4] sm:$0xf]
  %v107 = vld [vmem:[%s3 + $0x8] sm:$0xf]
  %v108 = vld [vmem:[%s3 + $0xc] sm:$0xf]
  %v109 = vld [vmem:[%s3 + $0x10] sm:$0xf]
  %v110 = vld [vmem:[%s3 + $0x14] sm:$0xf]
  %v111 = vld [vmem:[%s3 + $0x18] sm:$0xf]
  %v112 = vld [vmem:[%s3 + $0x1c] sm:$0xf]
  %v113 = vld [vmem:[%s3 + $0x20] sm:$0xf]
  %v114 = vld [vmem:[%s3 + $0x24] sm:$0xf]
  %v115 = vld [vmem:[%s3 + $0x28] sm:$0xf]
  %v116 = vld [vmem:[%s3 + $0x2c] sm:$0xf]
  %v117 = vld [vmem:[%s3 + $0x30] sm:$0xf]
  %v118 = vld [vmem:[%s3 + $0x34] sm:$0xf]
  %v119 = vld [vmem:[%s3 + $0x38] sm:$0xf]
  %v120 = vld [vmem:[%s3 + $0x3c] sm:$0xf]
  %v121 = vld [vmem:[%s4] sm:$0x1]
  %v123 = vlaneseq
  %v124 = vshrl.u32 %v123, 7
  %v125 = vsub.s32 0, %v124
  %v126 = vrot.slane %v121, %v125
  %v144 = vunpack.c.l.b16 %v105
  %v145 = vunpack.c.l.b16 %v106
  %v146 = vunpack.c.l.b16 %v107
  %v147 = vunpack.c.l.b16 %v108
  %v148 = vunpack.c.l.b16 %v109
  %v149 = vunpack.c.l.b16 %v110
  %v150 = vunpack.c.l.b16 %v111
  %v151 = vunpack.c.l.b16 %v112
  %v152 = vunpack.c.l.b16 %v113
  %v153 = vunpack.c.l.b16 %v114
  %v154 = vunpack.c.l.b16 %v115
  %v155 = vunpack.c.l.b16 %v116
  %v156 = vunpack.c.l.b16 %v117
  %v157 = vunpack.c.l.b16 %v118
  %v158 = vunpack.c.l.b16 %v119
  %v159 = vunpack.c.l.b16 %v120
  %v160 = vpack.c.b16 %v145, %v144
  %v161 = vpack.c.b16 %v147, %v146
  %v162 = vpack.c.b16 %v149, %v148
  %v163 = vpack.c.b16 %v151, %v150
  %v164 = vpack.c.b16 %v153, %v152
  %v165 = vpack.c.b16 %v155, %v154
  %v166 = vpack.c.b16 %v157, %v156
  %v167 = vpack.c.b16 %v159, %v158
  %176 = vmatprep.subr.bf16.mxu0 0
  %177 = vmatpush1.bf16.msra.mxu0 %v167
  %178 = vmatprep.subr.bf16.mxu0 0
  %179 = vmatpush1.bf16.msra.mxu0 %v166
  %180 = vmatprep.subr.bf16.mxu0 0
  %181 = vmatpush1.bf16.msra.mxu0 %v165
  %182 = vmatprep.subr.bf16.mxu0 0
  %183 = vmatpush1.bf16.msra.mxu0 %v164
  %184 = vmatprep.subr.bf16.mxu0 0
  %185 = vmatpush1.bf16.msra.mxu0 %v163
  %186 = vmatprep.subr.bf16.mxu0 0
  %187 = vmatpush1.bf16.msra.mxu0 %v162
  %188 = vmatprep.subr.bf16.mxu0 0
  %189 = vmatpush1.bf16.msra.mxu0 %v161
  %190 = vmatprep.subr.bf16.mxu0 0
  %191 = vmatpush1.bf16.msra.mxu0 %v160
  %192 = vmatprep.subr.bf16.mxu0 0
  %193 = vmatpush2.bf16.msra.mxu0 0
  %194 = vmatprep.subr.bf16.mxu0 0
  %195 = vmatpush2.bf16.msra.mxu0 0
  %196 = vmatprep.subr.bf16.mxu0 0
  %197 = vmatpush2.bf16.msra.mxu0 0
  %198 = vmatprep.subr.bf16.mxu0 0
  %199 = vmatpush2.bf16.msra.mxu0 0
  %200 = vmatprep.subr.bf16.mxu0 0
  %201 = vmatpush2.bf16.msra.mxu0 0
  %202 = vmatprep.subr.bf16.mxu0 0
  %203 = vmatpush2.bf16.msra.mxu0 0
  %204 = vmatprep.subr.bf16.mxu0 0
  %205 = vmatpush2.bf16.msra.mxu0 0
  %206 = vmatprep.subr.bf16.mxu0 0
  %207 = vmatpush2.bf16.msra.mxu0 0
  %208 = vmatprep.mubr.bf16.mxu0 0
  %209 = vmatmul.mubr.bf16.gmra.mxu0 %v104
  %v210 = vpop.f32.mrf.mxu0
  %v211 = vadd.f32 %v126, %v210
  %v212 = vpop.f32.mrf.mxu0
  %v213 = vpop.f32.mrf.mxu0
  %v214 = vpop.f32.mrf.mxu0
  %215 = vdwg.mxu0
  %v216 = vmax.f32 %v211, 0.0
  %v217 = vmin.f32 %v211, 0.0
  %v218 = vmul.f32 %v217, 1.442695
  %v219 = vpow.pop %v218
  %v220 = vsub.f32 %v219, 1.0
  %v221 = vmul.f32 %v220, 1.6732632
  %v222 = vadd.f32 %v216, %v221
  %v223 = vmul.f32 %v222, 1.050701
  %v224 = vpack.c.bf16 %v223, %v223
  %v225 = vld [vmem:[%s5] sm:$0xf]
  %v226 = vld [vmem:[%s5 + $0x4] sm:$0xf]
  %v227 = vld [vmem:[%s5 + $0x8] sm:$0xf]
  %v228 = vld [vmem:[%s5 + $0xc] sm:$0xf]
  %v229 = vld [vmem:[%s5 + $0x10] sm:$0xf]
  %v230 = vld [vmem:[%s5 + $0x14] sm:$0xf]
  %v231 = vld [vmem:[%s5 + $0x18] sm:$0xf]
  %v232 = vld [vmem:[%s5 + $0x1c] sm:$0xf]
  %v233 = vld [vmem:[%s5 + $0x20] sm:$0xf]
  %v234 = vld [vmem:[%s5 + $0x24] sm:$0xf]
  %v235 = vld [vmem:[%s5 + $0x28] sm:$0xf]
  %v236 = vld [vmem:[%s5 + $0x2c] sm:$0xf]
  %v237 = vld [vmem:[%s5 + $0x30] sm:$0xf]
  %v238 = vld [vmem:[%s5 + $0x34] sm:$0xf]
  %v239 = vld [vmem:[%s5 + $0x38] sm:$0xf]
  %v240 = vld [vmem:[%s5 + $0x3c] sm:$0xf]
  %v241 = vld [vmem:[%s6] sm:$0x1]
  %v243 = vlaneseq
  %v244 = vshrl.u32 %v243, 7
  %v245 = vsub.s32 0, %v244
  %v246 = vrot.slane %v241, %v245
  %v264 = vunpack.c.l.b16 %v225
  %v265 = vunpack.c.l.b16 %v226
  %v266 = vunpack.c.l.b16 %v227
  %v267 = vunpack.c.l.b16 %v228
  %v268 = vunpack.c.l.b16 %v229
  %v269 = vunpack.c.l.b16 %v230
  %v270 = vunpack.c.l.b16 %v231
  %v271 = vunpack.c.l.b16 %v232
  %v272 = vunpack.c.l.b16 %v233
  %v273 = vunpack.c.l.b16 %v234
  %v274 = vunpack.c.l.b16 %v235
  %v275 = vunpack.c.l.b16 %v236
  %v276 = vunpack.c.l.b16 %v237
  %v277 = vunpack.c.l.b16 %v238
  %v278 = vunpack.c.l.b16 %v239
  %v279 = vunpack.c.l.b16 %v240
  %v280 = vpack.c.b16 %v265, %v264
  %v281 = vpack.c.b16 %v267, %v266
  %v282 = vpack.c.b16 %v269, %v268
  %v283 = vpack.c.b16 %v271, %v270
  %v284 = vpack.c.b16 %v273, %v272
  %v285 = vpack.c.b16 %v275, %v274
  %v286 = vpack.c.b16 %v277, %v276
  %v287 = vpack.c.b16 %v279, %v278
  %296 = vmatprep.subr.bf16.mxu0 0
  %297 = vmatpush1.bf16.msra.mxu0 %v287
  %298 = vmatprep.subr.bf16.mxu0 0
  %299 = vmatpush1.bf16.msra.mxu0 %v286
  %300 = vmatprep.subr.bf16.mxu0 0
  %301 = vmatpush1.bf16.msra.mxu0 %v285
  %302 = vmatprep.subr.bf16.mxu0 0
  %303 = vmatpush1.bf16.msra.mxu0 %v284
  %304 = vmatprep.subr.bf16.mxu0 0
  %305 = vmatpush1.bf16.msra.mxu0 %v283
  %306 = vmatprep.subr.bf16.mxu0 0
  %307 = vmatpush1.bf16.msra.mxu0 %v282
  %308 = vmatprep.subr.bf16.mxu0 0
  %309 = vmatpush1.bf16.msra.mxu0 %v281
  %310 = vmatprep.subr.bf16.mxu0 0
  %311 = vmatpush1.bf16.msra.mxu0 %v280
  %312 = vmatprep.subr.bf16.mxu0 0
  %313 = vmatpush2.bf16.msra.mxu0 0
  %314 = vmatprep.subr.bf16.mxu0 0
  %315 = vmatpush2.bf16.msra.mxu0 0
  %316 = vmatprep.subr.bf16.mxu0 0
  %317 = vmatpush2.bf16.msra.mxu0 0
  %318 = vmatprep.subr.bf16.mxu0 0
  %319 = vmatpush2.bf16.msra.mxu0 0
  %320 = vmatprep.subr.bf16.mxu0 0
  %321 = vmatpush2.bf16.msra.mxu0 0
  %322 = vmatprep.subr.bf16.mxu0 0
  %323 = vmatpush2.bf16.msra.mxu0 0
  %324 = vmatprep.subr.bf16.mxu0 0
  %325 = vmatpush2.bf16.msra.mxu0 0
  %326 = vmatprep.subr.bf16.mxu0 0
  %327 = vmatpush2.bf16.msra.mxu0 0
  %328 = vmatprep.mubr.bf16.mxu0 0
  %329 = vmatmul.mubr.bf16.gmra.mxu0 %v224
  %v330 = vpop.f32.mrf.mxu0
  %v331 = vadd.f32 %v246, %v330
  %v332 = vpop.f32.mrf.mxu0
  %v333 = vpop.f32.mrf.mxu0
  %v334 = vpop.f32.mrf.mxu0
  %335 = vdwg.mxu0
  %v336 = vtanh.pop %v331
  %v337 = vmul.f32 %v336, 0.5
  %v338 = vadd.f32 %v337, 0.5
  %vm339 = vcmask 31744
  %340 = vst.msk [vmem:[%s7] sm:$0xff] %vm339, %v338
  // Predicated region
  $region30: #{net_regression_forward.1} parent=0 // pred_check
    _
  $region31: #{net_regression_forward.1} parent=0 // pred_check_branch
    %342 = sbr.rel (0) target = $region33
  $region32: #{net_regression_forward.1} parent=0 // pred_region
    _
  $region33: #{net_regression_forward.1} parent=0 // pred_fallthru
    _
  // Predicated region
  $region34: #{net_regression_forward.1} parent=0 // pred_check
    _
  $region35: #{net_regression_forward.1} parent=0 // pred_check_branch
    %344 = sbr.rel (0) target = $region37
  $region36: #{net_regression_forward.1} parent=0 // pred_region
    _
  $region37: #{net_regression_forward.1} parent=0 // pred_fallthru
    _

</llo_original>
